<compile_context>
chip_gen: v6e
topology: v6e:2x2x1
jax: 0.10.0
libtpu: 0.0.40
codegen_flags: <defaults>
</compile_context>

<pallas_src>
import jax
import jax.numpy as jnp
from jax.experimental import pallas as pl
from jax.experimental.pallas import tpu as pltpu

N_OUT = 1000          # fixed by .view(-1, 5, 2, 100)
N_PAD = 1024          # next multiple of 128 -> lane-dense stores, full MXU N passes


def _round_up(x, m):
    return (x + m - 1) // m * m


def prepare_bar_color_fc_params(weight, bias):
    """One-time parameter prep (do this at model init, NOT per forward call).

    weight: (1000, in_dim) f32 (PyTorch nn.Linear layout)
    bias:   (1000,) f32
    returns (in_dim, 1024) bf16 transposed/padded weight, (1, 1024) f32 bias.
    """
    N, K = weight.shape
    assert N == N_OUT
    w_t = jnp.transpose(weight).astype(jnp.bfloat16)          # (K, N)
    w_t = jnp.pad(w_t, ((0, 0), (0, N_PAD - N)))               # (K, N_PAD)
    b2d = jnp.pad(bias, (0, N_PAD - N)).reshape(1, N_PAD).astype(jnp.float32)
    return w_t, b2d


def _linear_kernel(x_ref, w_ref, b_ref, o_ref):
    # x_ref: (tm, K) f32   w_ref: (K, tn) bf16   b_ref: (1, tn) f32   o_ref: (tm, tn)
    x = x_ref[...].astype(jnp.bfloat16)          # cast fused into the kernel (VPU)
    acc = jnp.dot(x, w_ref[...], preferred_element_type=jnp.float32)
    o_ref[...] = (acc + b_ref[...]).astype(o_ref.dtype)


def bar_color_fc_forward(h, w_prepped, b_prepped, *, tm=None, n_split=1,
                         out_dtype=jnp.float32, reshape=True):
    """Forward pass of bar_color_fc.

    h:          (B, in_dim) f32 activations
    w_prepped:  (in_dim, 1024) bf16 from prepare_bar_color_fc_params
    b_prepped:  (1, 1024) f32 from prepare_bar_color_fc_params
    tm:         batch tile (None -> 256 if B>=512 else 128; use 128 on v5e)
    n_split:    N-parallel grid splits (2 recommended on v7x to fill both TCs)
    out_dtype:  jnp.float32 (module-faithful) or jnp.bfloat16 (halves writeback)
    reshape:    True -> (B, 5, 2, 100) like the module; False -> lane-dense (B, 1000)
    """
    B, K = h.shape
    assert w_prepped.shape == (K, N_PAD)
    assert b_prepped.shape == (1, N_PAD)
    assert N_PAD % n_split == 0 and (N_PAD // n_split) % 128 == 0
    tn = N_PAD // n_split

    if tm is None:
        tm = 256 if B >= 512 else 128

    # Minimize batch-pad waste: number of tiles from the requested tm, then the
    # smallest 16-aligned tile that covers B with that many tiles.
    num_m = int(pl.cdiv(B, tm))
    tm_eff = _round_up(-(-B // num_m), 16)
    b_pad = tm_eff * num_m
    if b_pad != B:
        h = jnp.pad(h, ((0, b_pad - B), (0, 0)))

    out_bytes = b_pad * N_PAD * jnp.dtype(out_dtype).itemsize
    cost = pl.CostEstimate(
        flops=2 * b_pad * K * N_PAD,
        transcendentals=0,
        bytes_accessed=(h.size * 4 * n_split          # f32 activations (re-read per N tile)
                        + w_prepped.size * 2          # bf16 weight, fetched once per N tile
                        + b_prepped.size * 4
                        + out_bytes),
    )

    y = pl.pallas_call(
        _linear_kernel,
        out_shape=jax.ShapeDtypeStruct((b_pad, N_PAD), out_dtype),
        grid_spec=pltpu.PrefetchScalarGridSpec(
            num_scalar_prefetch=0,
            # N-splits outer, batch tiles inner: weight block index is constant
            # across the inner batch sweep -> fetched once per N tile.
            grid=(n_split, num_m),
            in_specs=[
                pl.BlockSpec((tm_eff, K), lambda j, i: (i, 0)),   # activations
                pl.BlockSpec((K, tn), lambda j, i: (0, j)),       # weight (resident per j)
                pl.BlockSpec((1, tn), lambda j, i: (0, j)),       # bias (resident per j)
            ],
            out_specs=pl.BlockSpec((tm_eff, tn), lambda j, i: (i, j)),
        ),
        compiler_params=pltpu.CompilerParams(
            # Both axes independent -> shardable across v7x's 2 TensorCores.
            dimension_semantics=("parallel", "parallel"),
        ),
        cost_estimate=cost,
    )(h, w_prepped, b_prepped)

    y = y[:B, :N_OUT]
    if reshape:
        # Module-faithful view.  Prefer reshape=False + consumer-side view if
        # the 100-wide minor-dim relayout is avoidable downstream.
        return y.reshape(-1, 5, 2, 100)
    return y


if __name__ == "__main__":
    key = jax.random.PRNGKey(0)
    k_h, k_w, k_b, k_h2 = jax.random.split(key, 4)

    # Small shapes: in_dim=128 hidden, tiny batches.  N_OUT=1000 is fixed by
    # the module's .view(-1, 5, 2, 100).
    in_dim = 128
    B = 6
    h = jax.random.normal(k_h, (B, in_dim), dtype=jnp.float32)
    weight = jax.random.normal(k_w, (N_OUT, in_dim), dtype=jnp.float32) * 0.05
    bias = jax.random.normal(k_b, (N_OUT,), dtype=jnp.float32) * 0.05

    # One-time param prep, hoisted out of the hot path (per perf review).
    w_p, b_p = prepare_bar_color_fc_params(weight, bias)

    # PyTorch-equivalent f32 reference.
    ref = (h @ weight.T + bias).reshape(-1, 5, 2, 100)

    # Default config: f32 output, single N block, module-faithful reshape.
    out = jax.block_until_ready(bar_color_fc_forward(h, w_p, b_p))
    assert out.shape == (B, 5, 2, 100)
    assert jnp.allclose(out, ref, atol=3e-2, rtol=3e-2)

    # v7x-style config: 2-way N-parallel grid, multiple batch tiles (tm=16 to
    # exercise the multi-tile + pad path at small B), bf16 output flag.
    B2 = 40
    h2 = jax.random.normal(k_h2, (B2, in_dim), dtype=jnp.float32)
    ref2 = (h2 @ weight.T + bias).reshape(-1, 5, 2, 100)
    out2 = jax.block_until_ready(
        bar_color_fc_forward(h2, w_p, b_p, tm=16, n_split=2,
                             out_dtype=jnp.bfloat16, reshape=True))
    assert out2.shape == (B2, 5, 2, 100)
    assert jnp.allclose(out2.astype(jnp.float32), ref2, atol=8e-2, rtol=8e-2)

    # Deferred-reshape path returns the lane-dense (B, 1000) layout.
    out3 = jax.block_until_ready(
        bar_color_fc_forward(h, w_p, b_p, reshape=False))
    assert out3.shape == (B, N_OUT)
    assert jnp.allclose(out3.reshape(-1, 5, 2, 100), ref, atol=3e-2, rtol=3e-2)

    print("KERNEL_OK")
</pallas_src>

<mosaic_0001>
module attributes {stable_mosaic.version = 11 : i64} {
  func.func @_linear_kernel(%arg0: i32, %arg1: i32, %arg2: memref<16x128xf32, #tpu.memory_space<vmem>>, %arg3: memref<128x1024xbf16, #tpu.memory_space<vmem>>, %arg4: memref<1x1024xf32, #tpu.memory_space<vmem>>, %arg5: memref<16x1024xf32, #tpu.memory_space<vmem>>) attributes {dimension_semantics = [#tpu.dimension_semantics<parallel>, #tpu.dimension_semantics<parallel>], iteration_bounds = array<i64: 1, 1>, scalar_prefetch = 0 : i64, scratch_operands = 0 : i64, tpu.core_type = #tpu.core_type<tc>, window_params = [{transform_indices = @transform_0, window_bounds = array<i64: 16, 128>}, {transform_indices = @transform_1, window_bounds = array<i64: 128, 1024>}, {transform_indices = @transform_2, window_bounds = array<i64: 1, 1024>}, {transform_indices = @transform_3, window_bounds = array<i64: 16, 1024>}]} {
    %c0 = arith.constant 0 : index
    %c0_0 = arith.constant 0 : index
    %0 = vector.load %arg2[%c0, %c0_0] : memref<16x128xf32, #tpu.memory_space<vmem>>, vector<16x128xf32>
    %1 = arith.truncf %0 : vector<16x128xf32> to vector<16x128xbf16>
    %c0_1 = arith.constant 0 : index
    %c0_2 = arith.constant 0 : index
    %2 = vector.load %arg3[%c0_1, %c0_2] : memref<128x1024xbf16, #tpu.memory_space<vmem>>, vector<128x1024xbf16>
    %cst = arith.constant dense<0.000000e+00> : vector<16x1024xf32>
    %3 = tpu.matmul %1, %2, %cst {dimension_numbers = #tpu.dot_dimension_numbers<[1], [0], [0], [1], [0, 0, 1, 1], [], []>} : vector<16x128xbf16>, vector<128x1024xbf16>, vector<16x1024xf32> -> vector<16x1024xf32>
    %c0_3 = arith.constant 0 : index
    %c0_4 = arith.constant 0 : index
    %4 = vector.load %arg4[%c0_3, %c0_4] : memref<1x1024xf32, #tpu.memory_space<vmem>>, vector<1x1024xf32>
    %5 = vector.broadcast %4 : vector<1x1024xf32> to vector<16x1024xf32>
    %6 = arith.addf %3, %5 : vector<16x1024xf32>
    %c0_5 = arith.constant 0 : index
    %c0_6 = arith.constant 0 : index
    %7 = vector.load %arg5[%c0_5, %c0_6] : memref<16x1024xf32, #tpu.memory_space<vmem>>, vector<16x1024xf32>
    tpu.vector_store %arg5[%c0_5, %c0_6], %6 {strides = array<i32>} : memref<16x1024xf32, #tpu.memory_space<vmem>>, vector<16x1024xf32>,
    return
  }
  func.func @transform_0(%arg0: i32, %arg1: i32) -> (i32, i32) {
    %c0_i32 = arith.constant 0 : i32
    %c0_i32_0 = arith.constant 0 : i32
    return %arg1, %c0_i32 : i32, i32
  }
  func.func @transform_1(%arg0: i32, %arg1: i32) -> (i32, i32) {
    %c0_i32 = arith.constant 0 : i32
    %c0_i32_0 = arith.constant 0 : i32
    return %c0_i32, %arg0 : i32, i32
  }
  func.func @transform_2(%arg0: i32, %arg1: i32) -> (i32, i32) {
    %c0_i32 = arith.constant 0 : i32
    %c0_i32_0 = arith.constant 0 : i32
    return %c0_i32, %arg0 : i32, i32
  }
  func.func @transform_3(%arg0: i32, %arg1: i32) -> (i32, i32) {
    %c0_i32 = arith.constant 0 : i32
    return %arg1, %arg0 : i32, i32
  }
}

</mosaic_0001>

<llo_original>
// kernel: tpu_custom_call.1
$region0: #{tpu_custom_call.1}
  #allocation0 [shape = 'u32[]', space=smem, size = 0x4, offset = 0x4, fixed_abs, tag = 'smem constant byte address 0x4 - core index']
  #allocation1 [shape = 'u32[144,128]{1,0:T(1,128)}', space=vmem, size = 0x12000, scoped, tag = 'internal scratch']
  %s0 = inlined_call_operand.hbm [shape: f32[16,128], index: 0, kind: input, shape index: {}]
  %s1 = inlined_call_operand.hbm [shape: bf16[128,1024], index: 1, kind: input, shape index: {}]
  %s2 = inlined_call_operand.hbm [shape: f32[1,1024], index: 2, kind: input, shape index: {}]
  %s3 = inlined_call_operand.hbm [shape: f32[16,1024], index: 3, kind: output, shape index: {}]
  %s4 = sld [smem:[#allocation0]]
  $region34: #{tpu_custom_call.1} parent=0
    _
  %s6 = ssub.s32 1, %s4
  %s7 = scalar_select 0, %s6, %s4
  $region1: #{tpu_custom_call.1} parent=0
    #allocation2 [shape = 'u8[8192]{0}', space=vmem, size = 0x2000, scoped, tag = 'input window, operand 0, single buffered']
    #allocation3 [shape = 's32[1]{0}', space=sflag, size = 0x4, scoped, tag = 'scoped memory for tpu_custom_call.1']
    #allocation4 [shape = 's32[1]{0}', space=sflag, size = 0x4, scoped, tag = 'scoped memory for tpu_custom_call.1']
    #allocation5 [shape = 'u8[262144]{0}', space=vmem, size = 0x40000, scoped, tag = 'input window, operand 1, single buffered']
    #allocation6 [shape = 's32[1]{0}', space=sflag, size = 0x4, scoped, tag = 'scoped memory for tpu_custom_call.1']
    #allocation7 [shape = 'u8[4096]{0}', space=vmem, size = 0x1000, scoped, tag = 'input window, operand 2, single buffered']
    #allocation8 [shape = 'u8[65536]{0}', space=vmem, size = 0x10000, scoped, tag = 'output window, operand 0, single buffered']
    %8 = vsyncpa [#allocation3], 0
    %9 = vsyncpa [#allocation6], 0
    %10 = vsyncpa [#allocation4], 0
    // Predicated region
    $region2: #{tpu_custom_call.1} parent=1 // pred_check
      _
    $region3: #{tpu_custom_call.1} parent=1 // pred_check_branch
      %12 = sbr.rel (0) target = $region5
    $region4: #{tpu_custom_call.1} parent=1 // pred_region
      %s14 = ssub.s32 256, 256
      %15 = vsyncadd [#allocation3], %s14
      %s16 = sshll.u32 [#allocation2], 4
      %s17 = int_to_ptr.vmem [resolvable:$true] %s16
      %22 = dma.hbm_to_vmem [thread:$0]  %s0, 256, %s17, [#allocation3], 128, 128, 8
    $region5: #{tpu_custom_call.1} parent=1 // pred_fallthru
      _
    // Predicated region
    $region6: #{tpu_custom_call.1} parent=1 // pred_check
      _
    $region7: #{tpu_custom_call.1} parent=1 // pred_check_branch
      %24 = sbr.rel (0) target = $region9
    $region8: #{tpu_custom_call.1} parent=1 // pred_region
      %s26 = ssub.s32 8192, 8192
      %27 = vsyncadd [#allocation6], %s26
      %s28 = sshll.u32 [#allocation5], 4
      %s29 = int_to_ptr.vmem [resolvable:$true] %s28
      %34 = dma.hbm_to_vmem [thread:$0]  %s1, 8192, %s29, [#allocation6], 512, 512, 32
    $region9: #{tpu_custom_call.1} parent=1 // pred_fallthru
      _
    // Predicated region
    $region10: #{tpu_custom_call.1} parent=1 // pred_check
      _
    $region11: #{tpu_custom_call.1} parent=1 // pred_check_branch
      %36 = sbr.rel (0) target = $region13
    $region12: #{tpu_custom_call.1} parent=1 // pred_region
      %s38 = ssub.s32 128, 128
      %39 = vsyncadd [#allocation6], %s38
      %s41 = sshll.u32 [#allocation7], 4
      %s42 = int_to_ptr.vmem [resolvable:$true] %s41
      %44 = dma.hbm_to_vmem [thread:$0]  %s2, 128, %s42, [#allocation6]
    $region13: #{tpu_custom_call.1} parent=1 // pred_fallthru
      _
    // Predicated region
    $region14: #{tpu_custom_call.1} parent=1 // pred_check
      _
    $region15: #{tpu_custom_call.1} parent=1 // pred_check_branch
      %46 = sbr.rel (0) target = $region17
    $region16: #{tpu_custom_call.1} parent=1 // pred_region
      %47 = dma.done [#allocation3], 256
    $region17: #{tpu_custom_call.1} parent=1 // pred_fallthru
      _
    // Predicated region
    $region18: #{tpu_custom_call.1} parent=1 // pred_check
      _
    $region19: #{tpu_custom_call.1} parent=1 // pred_check_branch
      %49 = sbr.rel (0) target = $region21
    $region20: #{tpu_custom_call.1} parent=1 // pred_region
      %50 = dma.done [#allocation6], 8192
    $region21: #{tpu_custom_call.1} parent=1 // pred_fallthru
      _
    // Predicated region
    $region22: #{tpu_custom_call.1} parent=1 // pred_check
      _
    $region23: #{tpu_custom_call.1} parent=1 // pred_check_branch
      %52 = sbr.rel (0) target = $region25
    $region24: #{tpu_custom_call.1} parent=1 // pred_region
      %53 = dma.done [#allocation6], 128
    $region25: #{tpu_custom_call.1} parent=1 // pred_fallthru
      _
    %v55 = vld [vmem:[#allocation2] sm:$0xff]
    %v56 = vld [vmem:[#allocation2 + $0x8] sm:$0xff]
    %v57 = vpack.c.bf16 %v56, %v55
    %v58 = vld [vmem:[#allocation5] sm:$0xff]
    %v59 = vld [vmem:[#allocation5 + $0x8] sm:$0xff]
    %v60 = vld [vmem:[#allocation5 + $0x10] sm:$0xff]
    %v61 = vld [vmem:[#allocation5 + $0x18] sm:$0xff]
    %v62 = vld [vmem:[#allocation5 + $0x20] sm:$0xff]
    %v63 = vld [vmem:[#allocation5 + $0x28] sm:$0xff]
    %v64 = vld [vmem:[#allocation5 + $0x30] sm:$0xff]
    %v65 = vld [vmem:[#allocation5 + $0x38] sm:$0xff]
    %v66 = vld [vmem:[#allocation5 + $0x40] sm:$0xff]
    %v67 = vld [vmem:[#allocation5 + $0x48] sm:$0xff]
    %v68 = vld [vmem:[#allocation5 + $0x50] sm:$0xff]
    %v69 = vld [vmem:[#allocation5 + $0x58] sm:$0xff]
    %v70 = vld [vmem:[#allocation5 + $0x60] sm:$0xff]
    %v71 = vld [vmem:[#allocation5 + $0x68] sm:$0xff]
    %v72 = vld [vmem:[#allocation5 + $0x70] sm:$0xff]
    %v73 = vld [vmem:[#allocation5 + $0x78] sm:$0xff]
    %v74 = vld [vmem:[#allocation5 + $0x80] sm:$0xff]
    %v75 = vld [vmem:[#allocation5 + $0x88] sm:$0xff]
    %v76 = vld [vmem:[#allocation5 + $0x90] sm:$0xff]
    %v77 = vld [vmem:[#allocation5 + $0x98] sm:$0xff]
    %v78 = vld [vmem:[#allocation5 + $0xa0] sm:$0xff]
    %v79 = vld [vmem:[#allocation5 + $0xa8] sm:$0xff]
    %v80 = vld [vmem:[#allocation5 + $0xb0] sm:$0xff]
    %v81 = vld [vmem:[#allocation5 + $0xb8] sm:$0xff]
    %v82 = vld [vmem:[#allocation5 + $0xc0] sm:$0xff]
    %v83 = vld [vmem:[#allocation5 + $0xc8] sm:$0xff]
    %v84 = vld [vmem:[#allocation5 + $0xd0] sm:$0xff]
    %v85 = vld [vmem:[#allocation5 + $0xd8] sm:$0xff]
    %v86 = vld [vmem:[#allocation5 + $0xe0] sm:$0xff]
    %v87 = vld [vmem:[#allocation5 + $0xe8] sm:$0xff]
    %v88 = vld [vmem:[#allocation5 + $0xf0] sm:$0xff]
    %v89 = vld [vmem:[#allocation5 + $0xf8] sm:$0xff]
    %v90 = vld [vmem:[#allocation5 + $0x100] sm:$0xff]
    %v91 = vld [vmem:[#allocation5 + $0x108] sm:$0xff]
    %v92 = vld [vmem:[#allocation5 + $0x110] sm:$0xff]
    %v93 = vld [vmem:[#allocation5 + $0x118] sm:$0xff]
    %v94 = vld [vmem:[#allocation5 + $0x120] sm:$0xff]
    %v95 = vld [vmem:[#allocation5 + $0x128] sm:$0xff]
    %v96 = vld [vmem:[#allocation5 + $0x130] sm:$0xff]
    %v97 = vld [vmem:[#allocation5 + $0x138] sm:$0xff]
    %v98 = vld [vmem:[#allocation5 + $0x140] sm:$0xff]
    %v99 = vld [vmem:[#allocation5 + $0x148] sm:$0xff]
    %v100 = vld [vmem:[#allocation5 + $0x150] sm:$0xff]
    %v101 = vld [vmem:[#allocation5 + $0x158] sm:$0xff]
    %v102 = vld [vmem:[#allocation5 + $0x160] sm:$0xff]
    %v103 = vld [vmem:[#allocation5 + $0x168] sm:$0xff]
    %v104 = vld [vmem:[#allocation5 + $0x170] sm:$0xff]
    %v105 = vld [vmem:[#allocation5 + $0x178] sm:$0xff]
    %v106 = vld [vmem:[#allocation5 + $0x180] sm:$0xff]
    %v107 = vld [vmem:[#allocation5 + $0x188] sm:$0xff]
    %v108 = vld [vmem:[#allocation5 + $0x190] sm:$0xff]
    %v109 = vld [vmem:[#allocation5 + $0x198] sm:$0xff]
    %v110 = vld [vmem:[#allocation5 + $0x1a0] sm:$0xff]
    %v111 = vld [vmem:[#allocation5 + $0x1a8] sm:$0xff]
    %v112 = vld [vmem:[#allocation5 + $0x1b0] sm:$0xff]
    %v113 = vld [vmem:[#allocation5 + $0x1b8] sm:$0xff]
    %v114 = vld [vmem:[#allocation5 + $0x1c0] sm:$0xff]
    %v115 = vld [vmem:[#allocation5 + $0x1c8] sm:$0xff]
    %v116 = vld [vmem:[#allocation5 + $0x1d0] sm:$0xff]
    %v117 = vld [vmem:[#allocation5 + $0x1d8] sm:$0xff]
    %v118 = vld [vmem:[#allocation5 + $0x1e0] sm:$0xff]
    %v119 = vld [vmem:[#allocation5 + $0x1e8] sm:$0xff]
    %v120 = vld [vmem:[#allocation5 + $0x1f0] sm:$0xff]
    %v121 = vld [vmem:[#allocation5 + $0x1f8] sm:$0xff]
    %v122 = vld [vmem:[#allocation7] sm:$0xff]
    %v124 = vlaneseq
    %v125 = vshrl.u32 %v124, 7
    %v126 = vsub.s32 0, %v125
    %v127 = vrot.slane %v122, %v126
    %v128 = vlaneseq
    %v129 = vshrl.u32 %v128, 7
    %v130 = vsub.s32 1, %v129
    %v131 = vrot.slane %v122, %v130
    %v132 = vlaneseq
    %v133 = vshrl.u32 %v132, 7
    %v134 = vsub.s32 2, %v133
    %v135 = vrot.slane %v122, %v134
    %v136 = vlaneseq
    %v137 = vshrl.u32 %v136, 7
    %v138 = vsub.s32 3, %v137
    %v139 = vrot.slane %v122, %v138
    %v140 = vlaneseq
    %v141 = vshrl.u32 %v140, 7
    %v142 = vsub.s32 4, %v141
    %v143 = vrot.slane %v122, %v142
    %v144 = vlaneseq
    %v145 = vshrl.u32 %v144, 7
    %v146 = vsub.s32 5, %v145
    %v147 = vrot.slane %v122, %v146
    %v148 = vlaneseq
    %v149 = vshrl.u32 %v148, 7
    %v150 = vsub.s32 6, %v149
    %v151 = vrot.slane %v122, %v150
    %v152 = vlaneseq
    %v153 = vshrl.u32 %v152, 7
    %v154 = vsub.s32 7, %v153
    %v155 = vrot.slane %v122, %v154
    %v228 = vunpack.c.l.b16 %v58
    %v229 = vunpack.c.h.b16 %v58
    %v230 = vunpack.c.l.b16 %v59
    %v231 = vunpack.c.h.b16 %v59
    %v232 = vunpack.c.l.b16 %v60
    %v233 = vunpack.c.h.b16 %v60
    %v234 = vunpack.c.l.b16 %v61
    %v235 = vunpack.c.h.b16 %v61
    %v236 = vunpack.c.l.b16 %v62
    %v237 = vunpack.c.h.b16 %v62
    %v238 = vunpack.c.l.b16 %v63
    %v239 = vunpack.c.h.b16 %v63
    %v240 = vunpack.c.l.b16 %v64
    %v241 = vunpack.c.h.b16 %v64
    %v242 = vunpack.c.l.b16 %v65
    %v243 = vunpack.c.h.b16 %v65
    %v244 = vunpack.c.l.b16 %v66
    %v245 = vunpack.c.h.b16 %v66
    %v246 = vunpack.c.l.b16 %v67
    %v247 = vunpack.c.h.b16 %v67
    %v248 = vunpack.c.l.b16 %v68
    %v249 = vunpack.c.h.b16 %v68
    %v250 = vunpack.c.l.b16 %v69
    %v251 = vunpack.c.h.b16 %v69
    %v252 = vunpack.c.l.b16 %v70
    %v253 = vunpack.c.h.b16 %v70
    %v254 = vunpack.c.l.b16 %v71
    %v255 = vunpack.c.h.b16 %v71
    %v256 = vunpack.c.l.b16 %v72
    %v257 = vunpack.c.h.b16 %v72
    %v258 = vunpack.c.l.b16 %v73
    %v259 = vunpack.c.h.b16 %v73
    %v260 = vunpack.c.l.b16 %v74
    %v261 = vunpack.c.h.b16 %v74
    %v262 = vunpack.c.l.b16 %v75
    %v263 = vunpack.c.h.b16 %v75
    %v264 = vunpack.c.l.b16 %v76
    %v265 = vunpack.c.h.b16 %v76
    %v266 = vunpack.c.l.b16 %v77
    %v267 = vunpack.c.h.b16 %v77
    %v268 = vunpack.c.l.b16 %v78
    %v269 = vunpack.c.h.b16 %v78
    %v270 = vunpack.c.l.b16 %v79
    %v271 = vunpack.c.h.b16 %v79
    %v272 = vunpack.c.l.b16 %v80
    %v273 = vunpack.c.h.b16 %v80
    %v274 = vunpack.c.l.b16 %v81
    %v275 = vunpack.c.h.b16 %v81
    %v276 = vunpack.c.l.b16 %v82
    %v277 = vunpack.c.h.b16 %v82
    %v278 = vunpack.c.l.b16 %v83
    %v279 = vunpack.c.h.b16 %v83
    %v280 = vunpack.c.l.b16 %v84
    %v281 = vunpack.c.h.b16 %v84
    %v282 = vunpack.c.l.b16 %v85
    %v283 = vunpack.c.h.b16 %v85
    %v284 = vunpack.c.l.b16 %v86
    %v285 = vunpack.c.h.b16 %v86
    %v286 = vunpack.c.l.b16 %v87
    %v287 = vunpack.c.h.b16 %v87
    %v288 = vunpack.c.l.b16 %v88
    %v289 = vunpack.c.h.b16 %v88
    %v290 = vunpack.c.l.b16 %v89
    %v291 = vunpack.c.h.b16 %v89
    %v292 = vunpack.c.l.b16 %v90
    %v293 = vunpack.c.h.b16 %v90
    %v294 = vunpack.c.l.b16 %v91
    %v295 = vunpack.c.h.b16 %v91
    %v296 = vunpack.c.l.b16 %v92
    %v297 = vunpack.c.h.b16 %v92
    %v298 = vunpack.c.l.b16 %v93
    %v299 = vunpack.c.h.b16 %v93
    %v300 = vunpack.c.l.b16 %v94
    %v301 = vunpack.c.h.b16 %v94
    %v302 = vunpack.c.l.b16 %v95
    %v303 = vunpack.c.h.b16 %v95
    %v304 = vunpack.c.l.b16 %v96
    %v305 = vunpack.c.h.b16 %v96
    %v306 = vunpack.c.l.b16 %v97
    %v307 = vunpack.c.h.b16 %v97
    %v308 = vunpack.c.l.b16 %v98
    %v309 = vunpack.c.h.b16 %v98
    %v310 = vunpack.c.l.b16 %v99
    %v311 = vunpack.c.h.b16 %v99
    %v312 = vunpack.c.l.b16 %v100
    %v313 = vunpack.c.h.b16 %v100
    %v314 = vunpack.c.l.b16 %v101
    %v315 = vunpack.c.h.b16 %v101
    %v316 = vunpack.c.l.b16 %v102
    %v317 = vunpack.c.h.b16 %v102
    %v318 = vunpack.c.l.b16 %v103
    %v319 = vunpack.c.h.b16 %v103
    %v320 = vunpack.c.l.b16 %v104
    %v321 = vunpack.c.h.b16 %v104
    %v322 = vunpack.c.l.b16 %v105
    %v323 = vunpack.c.h.b16 %v105
    %v324 = vunpack.c.l.b16 %v106
    %v325 = vunpack.c.h.b16 %v106
    %v326 = vunpack.c.l.b16 %v107
    %v327 = vunpack.c.h.b16 %v107
    %v328 = vunpack.c.l.b16 %v108
    %v329 = vunpack.c.h.b16 %v108
    %v330 = vunpack.c.l.b16 %v109
    %v331 = vunpack.c.h.b16 %v109
    %v332 = vunpack.c.l.b16 %v110
    %v333 = vunpack.c.h.b16 %v110
    %v334 = vunpack.c.l.b16 %v111
    %v335 = vunpack.c.h.b16 %v111
    %v336 = vunpack.c.l.b16 %v112
    %v337 = vunpack.c.h.b16 %v112
    %v338 = vunpack.c.l.b16 %v113
    %v339 = vunpack.c.h.b16 %v113
    %v340 = vunpack.c.l.b16 %v114
    %v341 = vunpack.c.h.b16 %v114
    %v342 = vunpack.c.l.b16 %v115
    %v343 = vunpack.c.h.b16 %v115
    %v344 = vunpack.c.l.b16 %v116
    %v345 = vunpack.c.h.b16 %v116
    %v346 = vunpack.c.l.b16 %v117
    %v347 = vunpack.c.h.b16 %v117
    %v348 = vunpack.c.l.b16 %v118
    %v349 = vunpack.c.h.b16 %v118
    %v350 = vunpack.c.l.b16 %v119
    %v351 = vunpack.c.h.b16 %v119
    %v352 = vunpack.c.l.b16 %v120
    %v353 = vunpack.c.h.b16 %v120
    %v354 = vunpack.c.l.b16 %v121
    %v355 = vunpack.c.h.b16 %v121
    %v356 = vpack.c.b16 %v236, %v228
    %v357 = vpack.c.b16 %v237, %v229
    %v358 = vpack.c.b16 %v238, %v230
    %v359 = vpack.c.b16 %v239, %v231
    %v360 = vpack.c.b16 %v240, %v232
    %v361 = vpack.c.b16 %v241, %v233
    %v362 = vpack.c.b16 %v242, %v234
    %v363 = vpack.c.b16 %v243, %v235
    %v364 = vpack.c.b16 %v252, %v244
    %v365 = vpack.c.b16 %v253, %v245
    %v366 = vpack.c.b16 %v254, %v246
    %v367 = vpack.c.b16 %v255, %v247
    %v368 = vpack.c.b16 %v256, %v248
    %v369 = vpack.c.b16 %v257, %v249
    %v370 = vpack.c.b16 %v258, %v250
    %v371 = vpack.c.b16 %v259, %v251
    %v372 = vpack.c.b16 %v268, %v260
    %v373 = vpack.c.b16 %v269, %v261
    %v374 = vpack.c.b16 %v270, %v262
    %v375 = vpack.c.b16 %v271, %v263
    %v376 = vpack.c.b16 %v272, %v264
    %v377 = vpack.c.b16 %v273, %v265
    %v378 = vpack.c.b16 %v274, %v266
    %v379 = vpack.c.b16 %v275, %v267
    %v380 = vpack.c.b16 %v284, %v276
    %v381 = vpack.c.b16 %v285, %v277
    %v382 = vpack.c.b16 %v286, %v278
    %v383 = vpack.c.b16 %v287, %v279
    %v384 = vpack.c.b16 %v288, %v280
    %v385 = vpack.c.b16 %v289, %v281
    %v386 = vpack.c.b16 %v290, %v282
    %v387 = vpack.c.b16 %v291, %v283
    %v388 = vpack.c.b16 %v300, %v292
    %v389 = vpack.c.b16 %v301, %v293
    %v390 = vpack.c.b16 %v302, %v294
    %v391 = vpack.c.b16 %v303, %v295
    %v392 = vpack.c.b16 %v304, %v296
    %v393 = vpack.c.b16 %v305, %v297
    %v394 = vpack.c.b16 %v306, %v298
    %v395 = vpack.c.b16 %v307, %v299
    %v396 = vpack.c.b16 %v316, %v308
    %v397 = vpack.c.b16 %v317, %v309
    %v398 = vpack.c.b16 %v318, %v310
    %v399 = vpack.c.b16 %v319, %v311
    %v400 = vpack.c.b16 %v320, %v312
    %v401 = vpack.c.b16 %v321, %v313
    %v402 = vpack.c.b16 %v322, %v314
    %v403 = vpack.c.b16 %v323, %v315
    %v404 = vpack.c.b16 %v332, %v324
    %v405 = vpack.c.b16 %v333, %v325
    %v406 = vpack.c.b16 %v334, %v326
    %v407 = vpack.c.b16 %v335, %v327
    %v408 = vpack.c.b16 %v336, %v328
    %v409 = vpack.c.b16 %v337, %v329
    %v410 = vpack.c.b16 %v338, %v330
    %v411 = vpack.c.b16 %v339, %v331
    %v412 = vpack.c.b16 %v348, %v340
    %v413 = vpack.c.b16 %v349, %v341
    %v414 = vpack.c.b16 %v350, %v342
    %v415 = vpack.c.b16 %v351, %v343
    %v416 = vpack.c.b16 %v352, %v344
    %v417 = vpack.c.b16 %v353, %v345
    %v418 = vpack.c.b16 %v354, %v346
    %v419 = vpack.c.b16 %v355, %v347
    %484 = vmatprep.subr.bf16.mxu0 %v413
    %485 = vmatpush1.bf16.msra.mxu0 %v412
    %486 = vmatprep.subr.bf16.mxu0 %v405
    %487 = vmatpush1.bf16.msra.mxu0 %v404
    %488 = vmatprep.subr.bf16.mxu0 %v397
    %489 = vmatpush1.bf16.msra.mxu0 %v396
    %490 = vmatprep.subr.bf16.mxu0 %v389
    %491 = vmatpush1.bf16.msra.mxu0 %v388
    %492 = vmatprep.subr.bf16.mxu0 %v381
    %493 = vmatpush1.bf16.msra.mxu0 %v380
    %494 = vmatprep.subr.bf16.mxu0 %v373
    %495 = vmatpush1.bf16.msra.mxu0 %v372
    %496 = vmatprep.subr.bf16.mxu0 %v365
    %497 = vmatpush1.bf16.msra.mxu0 %v364
    %498 = vmatprep.subr.bf16.mxu0 %v357
    %499 = vmatpush1.bf16.msra.mxu0 %v356
    %500 = vmatprep.subr.bf16.mxu0 0
    %501 = vmatpush2.bf16.msra.mxu0 0
    %502 = vmatprep.subr.bf16.mxu0 0
    %503 = vmatpush2.bf16.msra.mxu0 0
    %504 = vmatprep.subr.bf16.mxu0 0
    %505 = vmatpush2.bf16.msra.mxu0 0
    %506 = vmatprep.subr.bf16.mxu0 0
    %507 = vmatpush2.bf16.msra.mxu0 0
    %508 = vmatprep.subr.bf16.mxu0 0
    %509 = vmatpush2.bf16.msra.mxu0 0
    %510 = vmatprep.subr.bf16.mxu0 0
    %511 = vmatpush2.bf16.msra.mxu0 0
    %512 = vmatprep.subr.bf16.mxu0 0
    %513 = vmatpush2.bf16.msra.mxu0 0
    %514 = vmatprep.subr.bf16.mxu0 0
    %515 = vmatpush2.bf16.msra.mxu0 0
    %516 = vmatprep.mubr.bf16.mxu0 0
    %517 = vmatmul.mubr.bf16.gmra.mxu0 %v57
    %v518 = vpop.f32.mrf.mxu0
    %v519 = vadd.f32 %v127, %v518
    %v520 = vpop.f32.mrf.mxu0
    %v521 = vadd.f32 %v131, %v520
    %v522 = vpop.f32.mrf.mxu0
    %v523 = vadd.f32 %v127, %v522
    %v524 = vpop.f32.mrf.mxu0
    %v525 = vadd.f32 %v131, %v524
    %526 = vdwg.mxu0
    %527 = vmatprep.subr.bf16.mxu0 %v415
    %528 = vmatpush1.bf16.msra.mxu0 %v414
    %529 = vmatprep.subr.bf16.mxu0 %v407
    %530 = vmatpush1.bf16.msra.mxu0 %v406
    %531 = vmatprep.subr.bf16.mxu0 %v399
    %532 = vmatpush1.bf16.msra.mxu0 %v398
    %533 = vmatprep.subr.bf16.mxu0 %v391
    %534 = vmatpush1.bf16.msra.mxu0 %v390
    %535 = vmatprep.subr.bf16.mxu0 %v383
    %536 = vmatpush1.bf16.msra.mxu0 %v382
    %537 = vmatprep.subr.bf16.mxu0 %v375
    %538 = vmatpush1.bf16.msra.mxu0 %v374
    %539 = vmatprep.subr.bf16.mxu0 %v367
    %540 = vmatpush1.bf16.msra.mxu0 %v366
    %541 = vmatprep.subr.bf16.mxu0 %v359
    %542 = vmatpush1.bf16.msra.mxu0 %v358
    %543 = vmatprep.subr.bf16.mxu0 0
    %544 = vmatpush2.bf16.msra.mxu0 0
    %545 = vmatprep.subr.bf16.mxu0 0
    %546 = vmatpush2.bf16.msra.mxu0 0
    %547 = vmatprep.subr.bf16.mxu0 0
    %548 = vmatpush2.bf16.msra.mxu0 0
    %549 = vmatprep.subr.bf16.mxu0 0
    %550 = vmatpush2.bf16.msra.mxu0 0
    %551 = vmatprep.subr.bf16.mxu0 0
    %552 = vmatpush2.bf16.msra.mxu0 0
    %553 = vmatprep.subr.bf16.mxu0 0
    %554 = vmatpush2.bf16.msra.mxu0 0
    %555 = vmatprep.subr.bf16.mxu0 0
    %556 = vmatpush2.bf16.msra.mxu0 0
    %557 = vmatprep.subr.bf16.mxu0 0
    %558 = vmatpush2.bf16.msra.mxu0 0
    %559 = vmatprep.mubr.bf16.mxu0 0
    %560 = vmatmul.mubr.bf16.gmra.mxu0 %v57
    %v561 = vpop.f32.mrf.mxu0
    %v562 = vadd.f32 %v135, %v561
    %v563 = vpop.f32.mrf.mxu0
    %v564 = vadd.f32 %v139, %v563
    %v565 = vpop.f32.mrf.mxu0
    %v566 = vadd.f32 %v135, %v565
    %v567 = vpop.f32.mrf.mxu0
    %v568 = vadd.f32 %v139, %v567
    %569 = vdwg.mxu0
    %570 = vmatprep.subr.bf16.mxu0 %v417
    %571 = vmatpush1.bf16.msra.mxu0 %v416
    %572 = vmatprep.subr.bf16.mxu0 %v409
    %573 = vmatpush1.bf16.msra.mxu0 %v408
    %574 = vmatprep.subr.bf16.mxu0 %v401
    %575 = vmatpush1.bf16.msra.mxu0 %v400
    %576 = vmatprep.subr.bf16.mxu0 %v393
    %577 = vmatpush1.bf16.msra.mxu0 %v392
    %578 = vmatprep.subr.bf16.mxu0 %v385
    %579 = vmatpush1.bf16.msra.mxu0 %v384
    %580 = vmatprep.subr.bf16.mxu0 %v377
    %581 = vmatpush1.bf16.msra.mxu0 %v376
    %582 = vmatprep.subr.bf16.mxu0 %v369
    %583 = vmatpush1.bf16.msra.mxu0 %v368
    %584 = vmatprep.subr.bf16.mxu0 %v361
    %585 = vmatpush1.bf16.msra.mxu0 %v360
    %586 = vmatprep.subr.bf16.mxu0 0
    %587 = vmatpush2.bf16.msra.mxu0 0
    %588 = vmatprep.subr.bf16.mxu0 0
    %589 = vmatpush2.bf16.msra.mxu0 0
    %590 = vmatprep.subr.bf16.mxu0 0
    %591 = vmatpush2.bf16.msra.mxu0 0
    %592 = vmatprep.subr.bf16.mxu0 0
    %593 = vmatpush2.bf16.msra.mxu0 0
    %594 = vmatprep.subr.bf16.mxu0 0
    %595 = vmatpush2.bf16.msra.mxu0 0
    %596 = vmatprep.subr.bf16.mxu0 0
    %597 = vmatpush2.bf16.msra.mxu0 0
    %598 = vmatprep.subr.bf16.mxu0 0
    %599 = vmatpush2.bf16.msra.mxu0 0
    %600 = vmatprep.subr.bf16.mxu0 0
    %601 = vmatpush2.bf16.msra.mxu0 0
    %602 = vmatprep.mubr.bf16.mxu0 0
    %603 = vmatmul.mubr.bf16.gmra.mxu0 %v57
    %v604 = vpop.f32.mrf.mxu0
    %v605 = vadd.f32 %v143, %v604
    %v606 = vpop.f32.mrf.mxu0
    %v607 = vadd.f32 %v147, %v606
    %v608 = vpop.f32.mrf.mxu0
    %v609 = vadd.f32 %v143, %v608
    %v610 = vpop.f32.mrf.mxu0
    %v611 = vadd.f32 %v147, %v610
    %612 = vdwg.mxu0
    %613 = vmatprep.subr.bf16.mxu0 %v419
    %614 = vmatpush1.bf16.msra.mxu0 %v418
    %615 = vmatprep.subr.bf16.mxu0 %v411
    %616 = vmatpush1.bf16.msra.mxu0 %v410
    %617 = vmatprep.subr.bf16.mxu0 %v403
    %618 = vmatpush1.bf16.msra.mxu0 %v402
    %619 = vmatprep.subr.bf16.mxu0 %v395
    %620 = vmatpush1.bf16.msra.mxu0 %v394
    %621 = vmatprep.subr.bf16.mxu0 %v387
    %622 = vmatpush1.bf16.msra.mxu0 %v386
    %623 = vmatprep.subr.bf16.mxu0 %v379
    %624 = vmatpush1.bf16.msra.mxu0 %v378
    %625 = vmatprep.subr.bf16.mxu0 %v371
    %626 = vmatpush1.bf16.msra.mxu0 %v370
    %627 = vmatprep.subr.bf16.mxu0 %v363
    %628 = vmatpush1.bf16.msra.mxu0 %v362
    %629 = vmatprep.subr.bf16.mxu0 0
    %630 = vmatpush2.bf16.msra.mxu0 0
    %631 = vmatprep.subr.bf16.mxu0 0
    %632 = vmatpush2.bf16.msra.mxu0 0
    %633 = vmatprep.subr.bf16.mxu0 0
    %634 = vmatpush2.bf16.msra.mxu0 0
    %635 = vmatprep.subr.bf16.mxu0 0
    %636 = vmatpush2.bf16.msra.mxu0 0
    %637 = vmatprep.subr.bf16.mxu0 0
    %638 = vmatpush2.bf16.msra.mxu0 0
    %639 = vmatprep.subr.bf16.mxu0 0
    %640 = vmatpush2.bf16.msra.mxu0 0
    %641 = vmatprep.subr.bf16.mxu0 0
    %642 = vmatpush2.bf16.msra.mxu0 0
    %643 = vmatprep.subr.bf16.mxu0 0
    %644 = vmatpush2.bf16.msra.mxu0 0
    %645 = vmatprep.mubr.bf16.mxu0 0
    %646 = vmatmul.mubr.bf16.gmra.mxu0 %v57
    %v647 = vpop.f32.mrf.mxu0
    %v648 = vadd.f32 %v151, %v647
    %v649 = vpop.f32.mrf.mxu0
    %v650 = vadd.f32 %v155, %v649
    %v651 = vpop.f32.mrf.mxu0
    %v652 = vadd.f32 %v151, %v651
    %v653 = vpop.f32.mrf.mxu0
    %v654 = vadd.f32 %v155, %v653
    %655 = vdwg.mxu0
    %656 = vst [vmem:[#allocation8] sm:$0xff] %v519
    %657 = vst [vmem:[#allocation8 + $0x8] sm:$0xff] %v521
    %658 = vst [vmem:[#allocation8 + $0x10] sm:$0xff] %v562
    %659 = vst [vmem:[#allocation8 + $0x18] sm:$0xff] %v564
    %660 = vst [vmem:[#allocation8 + $0x20] sm:$0xff] %v605
    %661 = vst [vmem:[#allocation8 + $0x28] sm:$0xff] %v607
    %662 = vst [vmem:[#allocation8 + $0x30] sm:$0xff] %v648
    %663 = vst [vmem:[#allocation8 + $0x38] sm:$0xff] %v650
    %664 = vst [vmem:[#allocation8 + $0x40] sm:$0xff] %v523
    %665 = vst [vmem:[#allocation8 + $0x48] sm:$0xff] %v525
    %666 = vst [vmem:[#allocation8 + $0x50] sm:$0xff] %v566
    %667 = vst [vmem:[#allocation8 + $0x58] sm:$0xff] %v568
    %668 = vst [vmem:[#allocation8 + $0x60] sm:$0xff] %v609
    %669 = vst [vmem:[#allocation8 + $0x68] sm:$0xff] %v611
    %670 = vst [vmem:[#allocation8 + $0x70] sm:$0xff] %v652
    %671 = vst [vmem:[#allocation8 + $0x78] sm:$0xff] %v654
    // Predicated region
    $region26: #{tpu_custom_call.1} parent=1 // pred_check
      _
    $region27: #{tpu_custom_call.1} parent=1 // pred_check_branch
      %673 = sbr.rel (0) target = $region29
    $region28: #{tpu_custom_call.1} parent=1 // pred_region
      %s675 = ssub.s32 2048, 2048
      %676 = vsyncadd [#allocation4], %s675
      %s677 = sshll.u32 [#allocation8], 4
      %s678 = int_to_ptr.vmem [resolvable:$true] %s677
      %683 = dma.vmem_to_hbm [thread:$0]  %s678, 2048, %s3, [#allocation4], 1024, 1024, 64
    $region29: #{tpu_custom_call.1} parent=1 // pred_fallthru
      _
    // Predicated region
    $region30: #{tpu_custom_call.1} parent=1 // pred_check
      _
    $region31: #{tpu_custom_call.1} parent=1 // pred_check_branch
      %685 = sbr.rel (0) target = $region33
    $region32: #{tpu_custom_call.1} parent=1 // pred_region
      %686 = dma.done [#allocation4], 2048
    $region33: #{tpu_custom_call.1} parent=1 // pred_fallthru
      _
    %687 = vsyncpa [#allocation3], 1
    %688 = vsyncpa [#allocation6], 1
    %689 = vsyncpa [#allocation4], 1

</llo_original>
